<compile_context>
chip_gen: v7x
topology: tpu7x:2x2x1
jax: 0.10.0
libtpu: 0.0.40
codegen_flags: <defaults>
</compile_context>

<pallas_src>
import functools

import jax
import jax.numpy as jnp
from jax.experimental import pallas as pl
from jax.experimental.pallas import tpu as pltpu


def _round_up(x, m):
    return (x + m - 1) // m * m


# ---------------------------------------------------------------------------
# Kernel: fused (proj+layer0) -> ReLU -> layer1 -> ReLU -> layer2 -> ReLU -> layer3
# Activations: [TM, features] (batch -> sublanes, features -> lanes, 128-padded).
# Weights are pre-transposed [in, out] so every matmul is row-major x @ W.
# ---------------------------------------------------------------------------
def grid_decoder_kernel(
    x_ref,                 # [TM, in_dim]            bf16
    w0_ref, b0_ref,        # [in_dim, Fp] bf16, [1, Fp] f32  (fused proj + hidden0)
    w1_ref, b1_ref,        # [Fp, Fp]    bf16, [1, Fp] f32
    w2_ref, b2_ref,        # [Fp, Fp]    bf16, [1, Fp] f32
    w3_ref, b3_ref,        # [Fp, Ap]    bf16, [1, Ap] f32   (final, no nonlinearity)
    out_ref,               # [TM, Ap]    f32
):
    x = x_ref[...]

    # fused projection + first hidden layer
    h = jnp.dot(x, w0_ref[...], preferred_element_type=jnp.float32) + b0_ref[...]
    h = jnp.maximum(h, 0.0)

    h = jnp.dot(h.astype(jnp.bfloat16), w1_ref[...],
                preferred_element_type=jnp.float32) + b1_ref[...]
    h = jnp.maximum(h, 0.0)

    h = jnp.dot(h.astype(jnp.bfloat16), w2_ref[...],
                preferred_element_type=jnp.float32) + b2_ref[...]
    h = jnp.maximum(h, 0.0)

    h = jnp.dot(h.astype(jnp.bfloat16), w3_ref[...],
                preferred_element_type=jnp.float32) + b3_ref[...]

    out_ref[...] = h.astype(out_ref.dtype)


# ---------------------------------------------------------------------------
# One-time parameter preparation (outside the kernel, run once):
#   - fold the Identity-nonlinearity projection into the first hidden layer
#   - zero-pad feature / action dims to multiples of 128 lanes
#   - cast weights to bf16 (biases stay f32)
# ---------------------------------------------------------------------------
def prepare_decoder_params(params, *, has_projection):
    if has_projection:
        w_in, b_in, w0, b0, w1, b1, w2, b2, w3, b3 = params
        w0f = w_in @ w0            # [in, feat]  (exact: no nonlinearity in between)
        b0f = b_in @ w0 + b0       # [1, feat]
    else:
        w0, b0, w1, b1, w2, b2, w3, b3 = params
        w0f, b0f = w0, b0

    feat = w1.shape[0]
    act = w3.shape[1]
    f_pad = _round_up(feat, 128)
    a_pad = _round_up(act, 128)

    def pad2(a, rows, cols):
        return jnp.pad(a, ((0, rows - a.shape[0]), (0, cols - a.shape[1])))

    w0p = pad2(w0f, w0f.shape[0], f_pad).astype(jnp.bfloat16)
    b0p = pad2(b0f, 1, f_pad)                                  # f32
    w1p = pad2(w1, f_pad, f_pad).astype(jnp.bfloat16)
    b1p = pad2(b1, 1, f_pad)
    w2p = pad2(w2, f_pad, f_pad).astype(jnp.bfloat16)
    b2p = pad2(b2, 1, f_pad)
    w3p = pad2(w3, f_pad, a_pad).astype(jnp.bfloat16)
    b3p = pad2(b3, 1, a_pad)
    return (w0p, b0p, w1p, b1p, w2p, b2p, w3p, b3p)


@functools.partial(jax.jit, static_argnames=("action_size",))
def grid_decoder_forward(x, prep, *, action_size):
    w0, b0, w1, b1, w2, b2, w3, b3 = prep
    B, in_dim = x.shape
    f_pad = w0.shape[1]
    a_pad = w3.shape[1]

    # Batch tiling: big tiles for large batches, minimal 8-row padding otherwise.
    tm = 256 if B >= 256 else _round_up(B, 8)
    b_pad = _round_up(B, tm)
    x_p = x if b_pad == B else jnp.pad(x, ((0, b_pad - B), (0, 0)))
    x_p = x_p.astype(jnp.bfloat16)

    grid = (b_pad // tm,)

    def resident(shape):
        # Full-extent block; same block for every grid step -> stays in VMEM.
        return pl.BlockSpec(shape, lambda i: (0, 0))

    flops = 2 * b_pad * (in_dim * f_pad + 2 * f_pad * f_pad + f_pad * a_pad)
    bytes_accessed = (
        x_p.size * 2
        + sum(a.size * a.dtype.itemsize for a in prep)
        + b_pad * a_pad * 4
    )

    out = pl.pallas_call(
        grid_decoder_kernel,
        out_shape=jax.ShapeDtypeStruct((b_pad, a_pad), jnp.float32),
        grid=grid,
        in_specs=[
            pl.BlockSpec((tm, in_dim), lambda i: (i, 0)),
            resident(w0.shape), resident(b0.shape),
            resident(w1.shape), resident(b1.shape),
            resident(w2.shape), resident(b2.shape),
            resident(w3.shape), resident(b3.shape),
        ],
        out_specs=pl.BlockSpec((tm, a_pad), lambda i: (i, 0)),
        compiler_params=pltpu.CompilerParams(
            dimension_semantics=("parallel",),          # megacore sharding on v7x
            vmem_limit_bytes=32 * 1024 * 1024,          # safe on v5e/v6e/v7x
        ),
        cost_estimate=pl.CostEstimate(
            flops=flops, transcendentals=0, bytes_accessed=bytes_accessed),
    )(x_p, w0, b0, w1, b1, w2, b2, w3, b3)

    return out[:B, :action_size]


# ---------------------------------------------------------------------------
# Init (mimics nn.Linear uniform +/- 1/sqrt(fan_in)); weights pre-transposed
# [in, out], biases [1, out]. Pure-JAX reference for correctness.
# ---------------------------------------------------------------------------
def init_params(key, input_size, feat_size, action_size):
    def linear_init(k, fan_in, fan_out):
        kw, kb = jax.random.split(k)
        bound = 1.0 / jnp.sqrt(jnp.float32(fan_in))
        w = jax.random.uniform(kw, (fan_in, fan_out), jnp.float32, -bound, bound)
        b = jax.random.uniform(kb, (1, fan_out), jnp.float32, -bound, bound)
        return w, b

    keys = jax.random.split(key, 5)
    w_in, b_in = linear_init(keys[0], input_size, feat_size)  # projection (Identity nl)
    w0, b0 = linear_init(keys[1], feat_size, feat_size)
    w1, b1 = linear_init(keys[2], feat_size, feat_size)
    w2, b2 = linear_init(keys[3], feat_size, feat_size)
    w3, b3 = linear_init(keys[4], feat_size, action_size)
    return (w_in, b_in, w0, b0, w1, b1, w2, b2, w3, b3)


def reference_forward(x, params):
    """Pure-JAX f32 reference of GridDecoder.forward (projection path)."""
    w_in, b_in, w0, b0, w1, b1, w2, b2, w3, b3 = params
    h = x @ w_in + b_in
    h = jnp.maximum(h @ w0 + b0, 0.0)
    h = jnp.maximum(h @ w1 + b1, 0.0)
    h = jnp.maximum(h @ w2 + b2, 0.0)
    return h @ w3 + b3


if __name__ == "__main__":
    INPUT_SIZE = 32    # latent size (!= feat_size -> projection LinearLayer is used)
    FEAT_SIZE = 64
    ACTION_SIZE = 16
    BATCH = 8

    key = jax.random.PRNGKey(0)
    k_x, k_p = jax.random.split(key)
    x = jax.random.normal(k_x, (BATCH, INPUT_SIZE), jnp.float32)
    params = init_params(k_p, INPUT_SIZE, FEAT_SIZE, ACTION_SIZE)

    prep = prepare_decoder_params(
        params, has_projection=(INPUT_SIZE != FEAT_SIZE))
    prep = jax.tree_util.tree_map(jax.block_until_ready, prep)

    out = grid_decoder_forward(x, prep, action_size=ACTION_SIZE)
    out = jax.block_until_ready(out)

    ref = reference_forward(x, params)
    assert out.shape == (BATCH, ACTION_SIZE)
    # bf16 matmul operands + pre-fused projection reorder rounding -> loose tol.
    rel_err = jnp.max(jnp.abs(out - ref)) / (jnp.max(jnp.abs(ref)) + 1e-6)
    assert rel_err < 3e-2, f"mismatch vs reference: rel_err={rel_err}"

    print("KERNEL_OK")
</pallas_src>

<mosaic_0001>
module attributes {stable_mosaic.version = 11 : i64} {
  func.func @grid_decoder_kernel(%arg0: i32, %arg1: memref<8x32xbf16, #tpu.memory_space<vmem>>, %arg2: memref<32x128xbf16, #tpu.memory_space<vmem>>, %arg3: memref<1x128xf32, #tpu.memory_space<vmem>>, %arg4: memref<128x128xbf16, #tpu.memory_space<vmem>>, %arg5: memref<1x128xf32, #tpu.memory_space<vmem>>, %arg6: memref<128x128xbf16, #tpu.memory_space<vmem>>, %arg7: memref<1x128xf32, #tpu.memory_space<vmem>>, %arg8: memref<128x128xbf16, #tpu.memory_space<vmem>>, %arg9: memref<1x128xf32, #tpu.memory_space<vmem>>, %arg10: memref<8x128xf32, #tpu.memory_space<vmem>>) attributes {dimension_semantics = [#tpu.dimension_semantics<parallel>], iteration_bounds = array<i64: 1>, scalar_prefetch = 0 : i64, scratch_operands = 0 : i64, tpu.core_type = #tpu.core_type<tc>, window_params = [{transform_indices = @transform_0, window_bounds = array<i64: 8, 32>}, {pipeline_mode = #tpu.pipeline_mode<synchronous>, transform_indices = @transform_1, window_bounds = array<i64: 32, 128>}, {pipeline_mode = #tpu.pipeline_mode<synchronous>, transform_indices = @transform_2, window_bounds = array<i64: 1, 128>}, {pipeline_mode = #tpu.pipeline_mode<synchronous>, transform_indices = @transform_3, window_bounds = array<i64: 128, 128>}, {pipeline_mode = #tpu.pipeline_mode<synchronous>, transform_indices = @transform_4, window_bounds = array<i64: 1, 128>}, {pipeline_mode = #tpu.pipeline_mode<synchronous>, transform_indices = @transform_5, window_bounds = array<i64: 128, 128>}, {pipeline_mode = #tpu.pipeline_mode<synchronous>, transform_indices = @transform_6, window_bounds = array<i64: 1, 128>}, {pipeline_mode = #tpu.pipeline_mode<synchronous>, transform_indices = @transform_7, window_bounds = array<i64: 128, 128>}, {pipeline_mode = #tpu.pipeline_mode<synchronous>, transform_indices = @transform_8, window_bounds = array<i64: 1, 128>}, {transform_indices = @transform_9, window_bounds = array<i64: 8, 128>}]} {
    %c0 = arith.constant 0 : index
    %c0_0 = arith.constant 0 : index
    %0 = vector.load %arg1[%c0, %c0_0] : memref<8x32xbf16, #tpu.memory_space<vmem>>, vector<8x32xbf16>
    %c0_1 = arith.constant 0 : index
    %c0_2 = arith.constant 0 : index
    %1 = vector.load %arg2[%c0_1, %c0_2] : memref<32x128xbf16, #tpu.memory_space<vmem>>, vector<32x128xbf16>
    %cst = arith.constant dense<0.000000e+00> : vector<8x128xf32>
    %2 = tpu.matmul %0, %1, %cst {dimension_numbers = #tpu.dot_dimension_numbers<[1], [0], [0], [1], [0, 0, 1, 1], [], []>} : vector<8x32xbf16>, vector<32x128xbf16>, vector<8x128xf32> -> vector<8x128xf32>
    %c0_3 = arith.constant 0 : index
    %c0_4 = arith.constant 0 : index
    %3 = vector.load %arg3[%c0_3, %c0_4] : memref<1x128xf32, #tpu.memory_space<vmem>>, vector<1x128xf32>
    %4 = vector.broadcast %3 : vector<1x128xf32> to vector<8x128xf32>
    %5 = arith.addf %2, %4 : vector<8x128xf32>
    %cst_5 = arith.constant 0.000000e+00 : f32
    %6 = vector.broadcast %cst_5 : f32 to vector<8x128xf32>
    %7 = arith.maximumf %5, %6 : vector<8x128xf32>
    %8 = arith.truncf %7 : vector<8x128xf32> to vector<8x128xbf16>
    %c0_6 = arith.constant 0 : index
    %c0_7 = arith.constant 0 : index
    %9 = vector.load %arg4[%c0_6, %c0_7] : memref<128x128xbf16, #tpu.memory_space<vmem>>, vector<128x128xbf16>
    %cst_8 = arith.constant dense<0.000000e+00> : vector<8x128xf32>
    %10 = tpu.matmul %8, %9, %cst_8 {dimension_numbers = #tpu.dot_dimension_numbers<[1], [0], [0], [1], [0, 0, 1, 1], [], []>} : vector<8x128xbf16>, vector<128x128xbf16>, vector<8x128xf32> -> vector<8x128xf32>
    %c0_9 = arith.constant 0 : index
    %c0_10 = arith.constant 0 : index
    %11 = vector.load %arg5[%c0_9, %c0_10] : memref<1x128xf32, #tpu.memory_space<vmem>>, vector<1x128xf32>
    %12 = vector.broadcast %11 : vector<1x128xf32> to vector<8x128xf32>
    %13 = arith.addf %10, %12 : vector<8x128xf32>
    %cst_11 = arith.constant 0.000000e+00 : f32
    %14 = vector.broadcast %cst_11 : f32 to vector<8x128xf32>
    %15 = arith.maximumf %13, %14 : vector<8x128xf32>
    %16 = arith.truncf %15 : vector<8x128xf32> to vector<8x128xbf16>
    %c0_12 = arith.constant 0 : index
    %c0_13 = arith.constant 0 : index
    %17 = vector.load %arg6[%c0_12, %c0_13] : memref<128x128xbf16, #tpu.memory_space<vmem>>, vector<128x128xbf16>
    %cst_14 = arith.constant dense<0.000000e+00> : vector<8x128xf32>
    %18 = tpu.matmul %16, %17, %cst_14 {dimension_numbers = #tpu.dot_dimension_numbers<[1], [0], [0], [1], [0, 0, 1, 1], [], []>} : vector<8x128xbf16>, vector<128x128xbf16>, vector<8x128xf32> -> vector<8x128xf32>
    %c0_15 = arith.constant 0 : index
    %c0_16 = arith.constant 0 : index
    %19 = vector.load %arg7[%c0_15, %c0_16] : memref<1x128xf32, #tpu.memory_space<vmem>>, vector<1x128xf32>
    %20 = vector.broadcast %19 : vector<1x128xf32> to vector<8x128xf32>
    %21 = arith.addf %18, %20 : vector<8x128xf32>
    %cst_17 = arith.constant 0.000000e+00 : f32
    %22 = vector.broadcast %cst_17 : f32 to vector<8x128xf32>
    %23 = arith.maximumf %21, %22 : vector<8x128xf32>
    %24 = arith.truncf %23 : vector<8x128xf32> to vector<8x128xbf16>
    %c0_18 = arith.constant 0 : index
    %c0_19 = arith.constant 0 : index
    %25 = vector.load %arg8[%c0_18, %c0_19] : memref<128x128xbf16, #tpu.memory_space<vmem>>, vector<128x128xbf16>
    %cst_20 = arith.constant dense<0.000000e+00> : vector<8x128xf32>
    %26 = tpu.matmul %24, %25, %cst_20 {dimension_numbers = #tpu.dot_dimension_numbers<[1], [0], [0], [1], [0, 0, 1, 1], [], []>} : vector<8x128xbf16>, vector<128x128xbf16>, vector<8x128xf32> -> vector<8x128xf32>
    %c0_21 = arith.constant 0 : index
    %c0_22 = arith.constant 0 : index
    %27 = vector.load %arg9[%c0_21, %c0_22] : memref<1x128xf32, #tpu.memory_space<vmem>>, vector<1x128xf32>
    %28 = vector.broadcast %27 : vector<1x128xf32> to vector<8x128xf32>
    %29 = arith.addf %26, %28 : vector<8x128xf32>
    %c0_23 = arith.constant 0 : index
    %c0_24 = arith.constant 0 : index
    %30 = vector.load %arg10[%c0_23, %c0_24] : memref<8x128xf32, #tpu.memory_space<vmem>>, vector<8x128xf32>
    tpu.vector_store %arg10[%c0_23, %c0_24], %29 {strides = array<i32>} : memref<8x128xf32, #tpu.memory_space<vmem>>, vector<8x128xf32>,
    return
  }
  func.func @transform_0(%arg0: i32) -> (i32, i32) {
    %c0_i32 = arith.constant 0 : i32
    %c0_i32_0 = arith.constant 0 : i32
    return %arg0, %c0_i32 : i32, i32
  }
  func.func @transform_1(%arg0: i32) -> (i32, i32) {
    %c0_i32 = arith.constant 0 : i32
    %c0_i32_0 = arith.constant 0 : i32
    %c0_i32_1 = arith.constant 0 : i32
    return %c0_i32, %c0_i32_0 : i32, i32
  }
  func.func @transform_2(%arg0: i32) -> (i32, i32) {
    %c0_i32 = arith.constant 0 : i32
    %c0_i32_0 = arith.constant 0 : i32
    %c0_i32_1 = arith.constant 0 : i32
    return %c0_i32, %c0_i32_0 : i32, i32
  }
  func.func @transform_3(%arg0: i32) -> (i32, i32) {
    %c0_i32 = arith.constant 0 : i32
    %c0_i32_0 = arith.constant 0 : i32
    %c0_i32_1 = arith.constant 0 : i32
    return %c0_i32, %c0_i32_0 : i32, i32
  }
  func.func @transform_4(%arg0: i32) -> (i32, i32) {
    %c0_i32 = arith.constant 0 : i32
    %c0_i32_0 = arith.constant 0 : i32
    %c0_i32_1 = arith.constant 0 : i32
    return %c0_i32, %c0_i32_0 : i32, i32
  }
  func.func @transform_5(%arg0: i32) -> (i32, i32) {
    %c0_i32 = arith.constant 0 : i32
    %c0_i32_0 = arith.constant 0 : i32
    %c0_i32_1 = arith.constant 0 : i32
    return %c0_i32, %c0_i32_0 : i32, i32
  }
  func.func @transform_6(%arg0: i32) -> (i32, i32) {
    %c0_i32 = arith.constant 0 : i32
    %c0_i32_0 = arith.constant 0 : i32
    %c0_i32_1 = arith.constant 0 : i32
    return %c0_i32, %c0_i32_0 : i32, i32
  }
  func.func @transform_7(%arg0: i32) -> (i32, i32) {
    %c0_i32 = arith.constant 0 : i32
    %c0_i32_0 = arith.constant 0 : i32
    %c0_i32_1 = arith.constant 0 : i32
    return %c0_i32, %c0_i32_0 : i32, i32
  }
  func.func @transform_8(%arg0: i32) -> (i32, i32) {
    %c0_i32 = arith.constant 0 : i32
    %c0_i32_0 = arith.constant 0 : i32
    %c0_i32_1 = arith.constant 0 : i32
    return %c0_i32, %c0_i32_0 : i32, i32
  }
  func.func @transform_9(%arg0: i32) -> (i32, i32) {
    %c0_i32 = arith.constant 0 : i32
    %c0_i32_0 = arith.constant 0 : i32
    return %arg0, %c0_i32 : i32, i32
  }
}

</mosaic_0001>

<llo_original>
// kernel: grid_decoder_forward.1
$region0: #{grid_decoder_forward.1}
  #allocation0 [shape = 'u32[]', space=smem, size = 0x4, offset = 0x4, fixed_abs, tag = 'smem constant byte address 0x4 - core index']
  #allocation1 [shape = 'u32[144,128]{1,0:T(1,128)}', space=vmem, size = 0x12000, scoped, tag = 'internal scratch']
  %s0 = inlined_call_operand.vmem [shape: bf16[8,32], index: 0, kind: input, shape index: {}]
  %s1 = inlined_call_operand.hbm [shape: bf16[32,128], index: 1, kind: input, shape index: {}]
  %s2 = inlined_call_operand.vmem [shape: f32[1,128], index: 2, kind: input, shape index: {}]
  %s3 = inlined_call_operand.hbm [shape: bf16[128,128], index: 3, kind: input, shape index: {}]
  %s4 = inlined_call_operand.vmem [shape: f32[1,128], index: 4, kind: input, shape index: {}]
  %s5 = inlined_call_operand.hbm [shape: bf16[128,128], index: 5, kind: input, shape index: {}]
  %s6 = inlined_call_operand.vmem [shape: f32[1,128], index: 6, kind: input, shape index: {}]
  %s7 = inlined_call_operand.hbm [shape: bf16[128,128], index: 7, kind: input, shape index: {}]
  %s8 = inlined_call_operand.vmem [shape: f32[1,128], index: 8, kind: input, shape index: {}]
  %s9 = inlined_call_operand.hbm [shape: f32[8,128], index: 9, kind: output, shape index: {}]
  %s10 = sld [smem:[#allocation0]]
  $region62: #{grid_decoder_forward.1} parent=0
    _
  %s12 = ssub.s32 1, %s10
  %s13 = scalar_select 0, %s12, %s10
  $region1: #{grid_decoder_forward.1} parent=0
    #allocation2 [shape = 'u8[8192]{0}', space=vmem, size = 0x2000, scoped, tag = 'input window, operand 1, single buffered']
    #allocation3 [shape = 's32[1]{0}', space=sflag, size = 0x4, scoped, tag = 'scoped memory for grid_decoder_forward.1']
    #allocation4 [shape = 's32[1]{0}', space=sflag, size = 0x4, scoped, tag = 'scoped memory for grid_decoder_forward.1']
    #allocation5 [shape = 'u8[32768]{0}', space=vmem, size = 0x8000, scoped, tag = 'input window, operand 3, single buffered']
    #allocation6 [shape = 's32[1]{0}', space=sflag, size = 0x4, scoped, tag = 'scoped memory for grid_decoder_forward.1']
    #allocation7 [shape = 'u8[32768]{0}', space=vmem, size = 0x8000, scoped, tag = 'input window, operand 5, single buffered']
    #allocation8 [shape = 'u8[32768]{0}', space=vmem, size = 0x8000, scoped, tag = 'input window, operand 7, single buffered']
    #allocation9 [shape = 's32[1]{0}', space=sflag, size = 0x4, scoped, tag = 'scoped memory for grid_decoder_forward.1']
    #allocation10 [shape = 'u8[4096]{0}', space=vmem, size = 0x1000, scoped, tag = 'output window, operand 0, single buffered']
    %14 = vsyncpa [#allocation3], 0
    %15 = vsyncpa [#allocation6], 0
    %16 = vsyncpa [#allocation9], 0
    %17 = vsyncpa [#allocation4], 0
    // Predicated region
    $region2: #{grid_decoder_forward.1} parent=1 // pred_check
      _
    $region3: #{grid_decoder_forward.1} parent=1 // pred_check_branch
      %19 = sbr.rel (0) target = $region5
    $region4: #{grid_decoder_forward.1} parent=1 // pred_region
      _
    $region5: #{grid_decoder_forward.1} parent=1 // pred_fallthru
      _
    // Predicated region
    $region6: #{grid_decoder_forward.1} parent=1 // pred_check
      _
    $region7: #{grid_decoder_forward.1} parent=1 // pred_check_branch
      %21 = sbr.rel (0) target = $region9
    $region8: #{grid_decoder_forward.1} parent=1 // pred_region
      %s23 = ssub.s32 256, 256
      %24 = vsyncadd [#allocation3], %s23
      %s25 = sshll.u32 [#allocation2], 4
      %s26 = int_to_ptr.vmem [resolvable:$true] %s25
      %31 = dma.hbm_to_vmem [thread:$0]  %s1, 256, %s26, [#allocation3], 64, 64, 4
    $region9: #{grid_decoder_forward.1} parent=1 // pred_fallthru
      _
    // Predicated region
    $region10: #{grid_decoder_forward.1} parent=1 // pred_check
      _
    $region11: #{grid_decoder_forward.1} parent=1 // pred_check_branch
      %33 = sbr.rel (0) target = $region13
    $region12: #{grid_decoder_forward.1} parent=1 // pred_region
      _
    $region13: #{grid_decoder_forward.1} parent=1 // pred_fallthru
      _
    // Predicated region
    $region14: #{grid_decoder_forward.1} parent=1 // pred_check
      _
    $region15: #{grid_decoder_forward.1} parent=1 // pred_check_branch
      %35 = sbr.rel (0) target = $region17
    $region16: #{grid_decoder_forward.1} parent=1 // pred_region
      %s37 = ssub.s32 1024, 1024
      %38 = vsyncadd [#allocation6], %s37
      %s39 = sshll.u32 [#allocation5], 4
      %s40 = int_to_ptr.vmem [resolvable:$true] %s39
      %45 = dma.hbm_to_vmem [thread:$0]  %s3, 1024, %s40, [#allocation6], 64, 64, 4
    $region17: #{grid_decoder_forward.1} parent=1 // pred_fallthru
      _
    // Predicated region
    $region18: #{grid_decoder_forward.1} parent=1 // pred_check
      _
    $region19: #{grid_decoder_forward.1} parent=1 // pred_check_branch
      %47 = sbr.rel (0) target = $region21
    $region20: #{grid_decoder_forward.1} parent=1 // pred_region
      _
    $region21: #{grid_decoder_forward.1} parent=1 // pred_fallthru
      _
    // Predicated region
    $region22: #{grid_decoder_forward.1} parent=1 // pred_check
      _
    $region23: #{grid_decoder_forward.1} parent=1 // pred_check_branch
      %49 = sbr.rel (0) target = $region25
    $region24: #{grid_decoder_forward.1} parent=1 // pred_region
      %s51 = ssub.s32 1024, 1024
      %52 = vsyncadd [#allocation6], %s51
      %s53 = sshll.u32 [#allocation7], 4
      %s54 = int_to_ptr.vmem [resolvable:$true] %s53
      %59 = dma.hbm_to_vmem [thread:$0]  %s5, 1024, %s54, [#allocation6], 64, 64, 4
    $region25: #{grid_decoder_forward.1} parent=1 // pred_fallthru
      _
    // Predicated region
    $region26: #{grid_decoder_forward.1} parent=1 // pred_check
      _
    $region27: #{grid_decoder_forward.1} parent=1 // pred_check_branch
      %61 = sbr.rel (0) target = $region29
    $region28: #{grid_decoder_forward.1} parent=1 // pred_region
      _
    $region29: #{grid_decoder_forward.1} parent=1 // pred_fallthru
      _
    // Predicated region
    $region30: #{grid_decoder_forward.1} parent=1 // pred_check
      _
    $region31: #{grid_decoder_forward.1} parent=1 // pred_check_branch
      %63 = sbr.rel (0) target = $region33
    $region32: #{grid_decoder_forward.1} parent=1 // pred_region
      %s65 = ssub.s32 1024, 1024
      %66 = vsyncadd [#allocation9], %s65
      %s67 = sshll.u32 [#allocation8], 4
      %s68 = int_to_ptr.vmem [resolvable:$true] %s67
      %73 = dma.hbm_to_vmem [thread:$0]  %s7, 1024, %s68, [#allocation9], 64, 64, 4
    $region33: #{grid_decoder_forward.1} parent=1 // pred_fallthru
      _
    // Predicated region
    $region34: #{grid_decoder_forward.1} parent=1 // pred_check
      _
    $region35: #{grid_decoder_forward.1} parent=1 // pred_check_branch
      %75 = sbr.rel (0) target = $region37
    $region36: #{grid_decoder_forward.1} parent=1 // pred_region
      _
    $region37: #{grid_decoder_forward.1} parent=1 // pred_fallthru
      _
    // Predicated region
    $region38: #{grid_decoder_forward.1} parent=1 // pred_check
      _
    $region39: #{grid_decoder_forward.1} parent=1 // pred_check_branch
      %77 = sbr.rel (0) target = $region41
    $region40: #{grid_decoder_forward.1} parent=1 // pred_region
      %78 = dma.done [#allocation3], 256
    $region41: #{grid_decoder_forward.1} parent=1 // pred_fallthru
      _
    // Predicated region
    $region42: #{grid_decoder_forward.1} parent=1 // pred_check
      _
    $region43: #{grid_decoder_forward.1} parent=1 // pred_check_branch
      %80 = sbr.rel (0) target = $region45
    $region44: #{grid_decoder_forward.1} parent=1 // pred_region
      %81 = dma.done [#allocation6], 1024
    $region45: #{grid_decoder_forward.1} parent=1 // pred_fallthru
      _
    // Predicated region
    $region46: #{grid_decoder_forward.1} parent=1 // pred_check
      _
    $region47: #{grid_decoder_forward.1} parent=1 // pred_check_branch
      %83 = sbr.rel (0) target = $region49
    $region48: #{grid_decoder_forward.1} parent=1 // pred_region
      %84 = dma.done [#allocation6], 1024
    $region49: #{grid_decoder_forward.1} parent=1 // pred_fallthru
      _
    // Predicated region
    $region50: #{grid_decoder_forward.1} parent=1 // pred_check
      _
    $region51: #{grid_decoder_forward.1} parent=1 // pred_check_branch
      %86 = sbr.rel (0) target = $region53
    $region52: #{grid_decoder_forward.1} parent=1 // pred_region
      %87 = dma.done [#allocation9], 1024
    $region53: #{grid_decoder_forward.1} parent=1 // pred_fallthru
      _
    %v89 = vld [vmem:[%s0] sm:$0xf]
    %v90 = vld [vmem:[#allocation2] sm:$0xf]
    %v91 = vld [vmem:[#allocation2 + $0x4] sm:$0xf]
    %v92 = vld [vmem:[#allocation2 + $0x8] sm:$0xf]
    %v93 = vld [vmem:[#allocation2 + $0xc] sm:$0xf]
    %v94 = vld [vmem:[%s2] sm:$0x1]
    %v96 = vlaneseq
    %v97 = vshrl.u32 %v96, 7
    %v98 = vsub.s32 0, %v97
    %v99 = vrot.slane %v94, %v98
    %v105 = vunpack.c.l.b16 %v90
    %v106 = vunpack.c.l.b16 %v91
    %v107 = vunpack.c.l.b16 %v92
    %v108 = vunpack.c.l.b16 %v93
    %v109 = vpack.c.b16 %v106, %v105
    %v110 = vpack.c.b16 %v108, %v107
    %vm113 = vcmask 261120
    %v115 = vsel %vm113, %v89, 0
    %117 = vmatprep.subr.bf16.mxu0 0
    %118 = vmatpush1.bf16.msra.mxu0 %v109
    %119 = vmatprep.subr.bf16.mxu0 0
    %120 = vmatpush1.bf16.msra.mxu0 %v110
    %121 = vmatprep.subr.bf16.mxu0 0
    %122 = vmatpush1.bf16.msra.mxu0 0
    %123 = vmatprep.subr.bf16.mxu0 0
    %124 = vmatpush1.bf16.msra.mxu0 0
    %125 = vmatprep.subr.bf16.mxu0 0
    %126 = vmatpush1.bf16.msra.mxu0 0
    %127 = vmatprep.subr.bf16.mxu0 0
    %128 = vmatpush1.bf16.msra.mxu0 0
    %129 = vmatprep.subr.bf16.mxu0 0
    %130 = vmatpush1.bf16.msra.mxu0 0
    %131 = vmatprep.subr.bf16.mxu0 0
    %132 = vmatpush1.bf16.msra.mxu0 0
    %133 = vmatprep.subr.bf16.mxu0 0
    %134 = vmatpush1.bf16.msra.mxu0 0
    %135 = vmatprep.subr.bf16.mxu0 0
    %136 = vmatpush1.bf16.msra.mxu0 0
    %137 = vmatprep.subr.bf16.mxu0 0
    %138 = vmatpush1.bf16.msra.mxu0 0
    %139 = vmatprep.subr.bf16.mxu0 0
    %140 = vmatpush1.bf16.msra.mxu0 0
    %141 = vmatprep.subr.bf16.mxu0 0
    %142 = vmatpush1.bf16.msra.mxu0 0
    %143 = vmatprep.subr.bf16.mxu0 0
    %144 = vmatpush1.bf16.msra.mxu0 0
    %145 = vmatprep.subr.bf16.mxu0 0
    %146 = vmatpush1.bf16.msra.mxu0 0
    %147 = vmatprep.subr.bf16.mxu0 0
    %148 = vmatpush1.bf16.msra.mxu0 0
    %149 = vmatprep.mubr.bf16.mxu0 0
    %150 = vmatmul.mubr.bf16.gmra.mrb[0].mxu0 %v115
    %v151 = vpop.f32.mrb[0].mxu0
    %v152 = vadd.f32 %v99, %v151
    %v153 = vpop.f32.mrb[0].mxu0
    %v154 = vpop.f32.mrb[0].mxu0
    %v155 = vpop.f32.mrb[0].mxu0
    %156 = vdwg.mxu0
    %v157 = vmax.f32 %v152, 0.0
    %v158 = vpack.c.bf16 %v157, %v157
    %v159 = vld [vmem:[#allocation5] sm:$0xf]
    %v160 = vld [vmem:[#allocation5 + $0x4] sm:$0xf]
    %v161 = vld [vmem:[#allocation5 + $0x8] sm:$0xf]
    %v162 = vld [vmem:[#allocation5 + $0xc] sm:$0xf]
    %v163 = vld [vmem:[#allocation5 + $0x10] sm:$0xf]
    %v164 = vld [vmem:[#allocation5 + $0x14] sm:$0xf]
    %v165 = vld [vmem:[#allocation5 + $0x18] sm:$0xf]
    %v166 = vld [vmem:[#allocation5 + $0x1c] sm:$0xf]
    %v167 = vld [vmem:[#allocation5 + $0x20] sm:$0xf]
    %v168 = vld [vmem:[#allocation5 + $0x24] sm:$0xf]
    %v169 = vld [vmem:[#allocation5 + $0x28] sm:$0xf]
    %v170 = vld [vmem:[#allocation5 + $0x2c] sm:$0xf]
    %v171 = vld [vmem:[#allocation5 + $0x30] sm:$0xf]
    %v172 = vld [vmem:[#allocation5 + $0x34] sm:$0xf]
    %v173 = vld [vmem:[#allocation5 + $0x38] sm:$0xf]
    %v174 = vld [vmem:[#allocation5 + $0x3c] sm:$0xf]
    %v175 = vld [vmem:[%s4] sm:$0x1]
    %v177 = vlaneseq
    %v178 = vshrl.u32 %v177, 7
    %v179 = vsub.s32 0, %v178
    %v180 = vrot.slane %v175, %v179
    %v198 = vunpack.c.l.b16 %v159
    %v199 = vunpack.c.l.b16 %v160
    %v200 = vunpack.c.l.b16 %v161
    %v201 = vunpack.c.l.b16 %v162
    %v202 = vunpack.c.l.b16 %v163
    %v203 = vunpack.c.l.b16 %v164
    %v204 = vunpack.c.l.b16 %v165
    %v205 = vunpack.c.l.b16 %v166
    %v206 = vunpack.c.l.b16 %v167
    %v207 = vunpack.c.l.b16 %v168
    %v208 = vunpack.c.l.b16 %v169
    %v209 = vunpack.c.l.b16 %v170
    %v210 = vunpack.c.l.b16 %v171
    %v211 = vunpack.c.l.b16 %v172
    %v212 = vunpack.c.l.b16 %v173
    %v213 = vunpack.c.l.b16 %v174
    %v214 = vpack.c.b16 %v199, %v198
    %v215 = vpack.c.b16 %v201, %v200
    %v216 = vpack.c.b16 %v203, %v202
    %v217 = vpack.c.b16 %v205, %v204
    %v218 = vpack.c.b16 %v207, %v206
    %v219 = vpack.c.b16 %v209, %v208
    %v220 = vpack.c.b16 %v211, %v210
    %v221 = vpack.c.b16 %v213, %v212
    %230 = vmatprep.subr.bf16.mxu0 0
    %231 = vmatpush1.bf16.msra.mxu0 %v214
    %232 = vmatprep.subr.bf16.mxu0 0
    %233 = vmatpush1.bf16.msra.mxu0 %v215
    %234 = vmatprep.subr.bf16.mxu0 0
    %235 = vmatpush1.bf16.msra.mxu0 %v216
    %236 = vmatprep.subr.bf16.mxu0 0
    %237 = vmatpush1.bf16.msra.mxu0 %v217
    %238 = vmatprep.subr.bf16.mxu0 0
    %239 = vmatpush1.bf16.msra.mxu0 %v218
    %240 = vmatprep.subr.bf16.mxu0 0
    %241 = vmatpush1.bf16.msra.mxu0 %v219
    %242 = vmatprep.subr.bf16.mxu0 0
    %243 = vmatpush1.bf16.msra.mxu0 %v220
    %244 = vmatprep.subr.bf16.mxu0 0
    %245 = vmatpush1.bf16.msra.mxu0 %v221
    %246 = vmatprep.subr.bf16.mxu0 0
    %247 = vmatpush1.bf16.msra.mxu0 0
    %248 = vmatprep.subr.bf16.mxu0 0
    %249 = vmatpush1.bf16.msra.mxu0 0
    %250 = vmatprep.subr.bf16.mxu0 0
    %251 = vmatpush1.bf16.msra.mxu0 0
    %252 = vmatprep.subr.bf16.mxu0 0
    %253 = vmatpush1.bf16.msra.mxu0 0
    %254 = vmatprep.subr.bf16.mxu0 0
    %255 = vmatpush1.bf16.msra.mxu0 0
    %256 = vmatprep.subr.bf16.mxu0 0
    %257 = vmatpush1.bf16.msra.mxu0 0
    %258 = vmatprep.subr.bf16.mxu0 0
    %259 = vmatpush1.bf16.msra.mxu0 0
    %260 = vmatprep.subr.bf16.mxu0 0
    %261 = vmatpush1.bf16.msra.mxu0 0
    %262 = vmatprep.mubr.bf16.mxu0 0
    %263 = vmatmul.mubr.bf16.gmra.mrb[0].mxu0 %v158
    %v264 = vpop.f32.mrb[0].mxu0
    %v265 = vadd.f32 %v180, %v264
    %v266 = vpop.f32.mrb[0].mxu0
    %v267 = vpop.f32.mrb[0].mxu0
    %v268 = vpop.f32.mrb[0].mxu0
    %269 = vdwg.mxu0
    %v270 = vmax.f32 %v265, 0.0
    %v271 = vpack.c.bf16 %v270, %v270
    %v272 = vld [vmem:[#allocation7] sm:$0xf]
    %v273 = vld [vmem:[#allocation7 + $0x4] sm:$0xf]
    %v274 = vld [vmem:[#allocation7 + $0x8] sm:$0xf]
    %v275 = vld [vmem:[#allocation7 + $0xc] sm:$0xf]
    %v276 = vld [vmem:[#allocation7 + $0x10] sm:$0xf]
    %v277 = vld [vmem:[#allocation7 + $0x14] sm:$0xf]
    %v278 = vld [vmem:[#allocation7 + $0x18] sm:$0xf]
    %v279 = vld [vmem:[#allocation7 + $0x1c] sm:$0xf]
    %v280 = vld [vmem:[#allocation7 + $0x20] sm:$0xf]
    %v281 = vld [vmem:[#allocation7 + $0x24] sm:$0xf]
    %v282 = vld [vmem:[#allocation7 + $0x28] sm:$0xf]
    %v283 = vld [vmem:[#allocation7 + $0x2c] sm:$0xf]
    %v284 = vld [vmem:[#allocation7 + $0x30] sm:$0xf]
    %v285 = vld [vmem:[#allocation7 + $0x34] sm:$0xf]
    %v286 = vld [vmem:[#allocation7 + $0x38] sm:$0xf]
    %v287 = vld [vmem:[#allocation7 + $0x3c] sm:$0xf]
    %v288 = vld [vmem:[%s6] sm:$0x1]
    %v290 = vlaneseq
    %v291 = vshrl.u32 %v290, 7
    %v292 = vsub.s32 0, %v291
    %v293 = vrot.slane %v288, %v292
    %v311 = vunpack.c.l.b16 %v272
    %v312 = vunpack.c.l.b16 %v273
    %v313 = vunpack.c.l.b16 %v274
    %v314 = vunpack.c.l.b16 %v275
    %v315 = vunpack.c.l.b16 %v276
    %v316 = vunpack.c.l.b16 %v277
    %v317 = vunpack.c.l.b16 %v278
    %v318 = vunpack.c.l.b16 %v279
    %v319 = vunpack.c.l.b16 %v280
    %v320 = vunpack.c.l.b16 %v281
    %v321 = vunpack.c.l.b16 %v282
    %v322 = vunpack.c.l.b16 %v283
    %v323 = vunpack.c.l.b16 %v284
    %v324 = vunpack.c.l.b16 %v285
    %v325 = vunpack.c.l.b16 %v286
    %v326 = vunpack.c.l.b16 %v287
    %v327 = vpack.c.b16 %v312, %v311
    %v328 = vpack.c.b16 %v314, %v313
    %v329 = vpack.c.b16 %v316, %v315
    %v330 = vpack.c.b16 %v318, %v317
    %v331 = vpack.c.b16 %v320, %v319
    %v332 = vpack.c.b16 %v322, %v321
    %v333 = vpack.c.b16 %v324, %v323
    %v334 = vpack.c.b16 %v326, %v325
    %343 = vmatprep.subr.bf16.mxu0 0
    %344 = vmatpush1.bf16.msra.mxu0 %v327
    %345 = vmatprep.subr.bf16.mxu0 0
    %346 = vmatpush1.bf16.msra.mxu0 %v328
    %347 = vmatprep.subr.bf16.mxu0 0
    %348 = vmatpush1.bf16.msra.mxu0 %v329
    %349 = vmatprep.subr.bf16.mxu0 0
    %350 = vmatpush1.bf16.msra.mxu0 %v330
    %351 = vmatprep.subr.bf16.mxu0 0
    %352 = vmatpush1.bf16.msra.mxu0 %v331
    %353 = vmatprep.subr.bf16.mxu0 0
    %354 = vmatpush1.bf16.msra.mxu0 %v332
    %355 = vmatprep.subr.bf16.mxu0 0
    %356 = vmatpush1.bf16.msra.mxu0 %v333
    %357 = vmatprep.subr.bf16.mxu0 0
    %358 = vmatpush1.bf16.msra.mxu0 %v334
    %359 = vmatprep.subr.bf16.mxu0 0
    %360 = vmatpush1.bf16.msra.mxu0 0
    %361 = vmatprep.subr.bf16.mxu0 0
    %362 = vmatpush1.bf16.msra.mxu0 0
    %363 = vmatprep.subr.bf16.mxu0 0
    %364 = vmatpush1.bf16.msra.mxu0 0
    %365 = vmatprep.subr.bf16.mxu0 0
    %366 = vmatpush1.bf16.msra.mxu0 0
    %367 = vmatprep.subr.bf16.mxu0 0
    %368 = vmatpush1.bf16.msra.mxu0 0
    %369 = vmatprep.subr.bf16.mxu0 0
    %370 = vmatpush1.bf16.msra.mxu0 0
    %371 = vmatprep.subr.bf16.mxu0 0
    %372 = vmatpush1.bf16.msra.mxu0 0
    %373 = vmatprep.subr.bf16.mxu0 0
    %374 = vmatpush1.bf16.msra.mxu0 0
    %375 = vmatprep.mubr.bf16.mxu0 0
    %376 = vmatmul.mubr.bf16.gmra.mrb[0].mxu0 %v271
    %v377 = vpop.f32.mrb[0].mxu0
    %v378 = vadd.f32 %v293, %v377
    %v379 = vpop.f32.mrb[0].mxu0
    %v380 = vpop.f32.mrb[0].mxu0
    %v381 = vpop.f32.mrb[0].mxu0
    %382 = vdwg.mxu0
    %v383 = vmax.f32 %v378, 0.0
    %v384 = vpack.c.bf16 %v383, %v383
    %v385 = vld [vmem:[#allocation8] sm:$0xf]
    %v386 = vld [vmem:[#allocation8 + $0x4] sm:$0xf]
    %v387 = vld [vmem:[#allocation8 + $0x8] sm:$0xf]
    %v388 = vld [vmem:[#allocation8 + $0xc] sm:$0xf]
    %v389 = vld [vmem:[#allocation8 + $0x10] sm:$0xf]
    %v390 = vld [vmem:[#allocation8 + $0x14] sm:$0xf]
    %v391 = vld [vmem:[#allocation8 + $0x18] sm:$0xf]
    %v392 = vld [vmem:[#allocation8 + $0x1c] sm:$0xf]
    %v393 = vld [vmem:[#allocation8 + $0x20] sm:$0xf]
    %v394 = vld [vmem:[#allocation8 + $0x24] sm:$0xf]
    %v395 = vld [vmem:[#allocation8 + $0x28] sm:$0xf]
    %v396 = vld [vmem:[#allocation8 + $0x2c] sm:$0xf]
    %v397 = vld [vmem:[#allocation8 + $0x30] sm:$0xf]
    %v398 = vld [vmem:[#allocation8 + $0x34] sm:$0xf]
    %v399 = vld [vmem:[#allocation8 + $0x38] sm:$0xf]
    %v400 = vld [vmem:[#allocation8 + $0x3c] sm:$0xf]
    %v401 = vld [vmem:[%s8] sm:$0x1]
    %v403 = vlaneseq
    %v404 = vshrl.u32 %v403, 7
    %v405 = vsub.s32 0, %v404
    %v406 = vrot.slane %v401, %v405
    %v424 = vunpack.c.l.b16 %v385
    %v425 = vunpack.c.l.b16 %v386
    %v426 = vunpack.c.l.b16 %v387
    %v427 = vunpack.c.l.b16 %v388
    %v428 = vunpack.c.l.b16 %v389
    %v429 = vunpack.c.l.b16 %v390
    %v430 = vunpack.c.l.b16 %v391
    %v431 = vunpack.c.l.b16 %v392
    %v432 = vunpack.c.l.b16 %v393
    %v433 = vunpack.c.l.b16 %v394
    %v434 = vunpack.c.l.b16 %v395
    %v435 = vunpack.c.l.b16 %v396
    %v436 = vunpack.c.l.b16 %v397
    %v437 = vunpack.c.l.b16 %v398
    %v438 = vunpack.c.l.b16 %v399
    %v439 = vunpack.c.l.b16 %v400
    %v440 = vpack.c.b16 %v425, %v424
    %v441 = vpack.c.b16 %v427, %v426
    %v442 = vpack.c.b16 %v429, %v428
    %v443 = vpack.c.b16 %v431, %v430
    %v444 = vpack.c.b16 %v433, %v432
    %v445 = vpack.c.b16 %v435, %v434
    %v446 = vpack.c.b16 %v437, %v436
    %v447 = vpack.c.b16 %v439, %v438
    %456 = vmatprep.subr.bf16.mxu0 0
    %457 = vmatpush1.bf16.msra.mxu0 %v440
    %458 = vmatprep.subr.bf16.mxu0 0
    %459 = vmatpush1.bf16.msra.mxu0 %v441
    %460 = vmatprep.subr.bf16.mxu0 0
    %461 = vmatpush1.bf16.msra.mxu0 %v442
    %462 = vmatprep.subr.bf16.mxu0 0
    %463 = vmatpush1.bf16.msra.mxu0 %v443
    %464 = vmatprep.subr.bf16.mxu0 0
    %465 = vmatpush1.bf16.msra.mxu0 %v444
    %466 = vmatprep.subr.bf16.mxu0 0
    %467 = vmatpush1.bf16.msra.mxu0 %v445
    %468 = vmatprep.subr.bf16.mxu0 0
    %469 = vmatpush1.bf16.msra.mxu0 %v446
    %470 = vmatprep.subr.bf16.mxu0 0
    %471 = vmatpush1.bf16.msra.mxu0 %v447
    %472 = vmatprep.subr.bf16.mxu0 0
    %473 = vmatpush1.bf16.msra.mxu0 0
    %474 = vmatprep.subr.bf16.mxu0 0
    %475 = vmatpush1.bf16.msra.mxu0 0
    %476 = vmatprep.subr.bf16.mxu0 0
    %477 = vmatpush1.bf16.msra.mxu0 0
    %478 = vmatprep.subr.bf16.mxu0 0
    %479 = vmatpush1.bf16.msra.mxu0 0
    %480 = vmatprep.subr.bf16.mxu0 0
    %481 = vmatpush1.bf16.msra.mxu0 0
    %482 = vmatprep.subr.bf16.mxu0 0
    %483 = vmatpush1.bf16.msra.mxu0 0
    %484 = vmatprep.subr.bf16.mxu0 0
    %485 = vmatpush1.bf16.msra.mxu0 0
    %486 = vmatprep.subr.bf16.mxu0 0
    %487 = vmatpush1.bf16.msra.mxu0 0
    %488 = vmatprep.mubr.bf16.mxu0 0
    %489 = vmatmul.mubr.bf16.gmra.mrb[0].mxu0 %v384
    %v490 = vpop.f32.mrb[0].mxu0
    %v491 = vadd.f32 %v406, %v490
    %v492 = vpop.f32.mrb[0].mxu0
    %v493 = vpop.f32.mrb[0].mxu0
    %v494 = vpop.f32.mrb[0].mxu0
    %495 = vdwg.mxu0
    %496 = vst [vmem:[#allocation10] sm:$0xff] %v491
    // Predicated region
    $region54: #{grid_decoder_forward.1} parent=1 // pred_check
      _
    $region55: #{grid_decoder_forward.1} parent=1 // pred_check_branch
      %498 = sbr.rel (0) target = $region57
    $region56: #{grid_decoder_forward.1} parent=1 // pred_region
      %s500 = ssub.s32 128, 128
      %501 = vsyncadd [#allocation4], %s500
      %s503 = sshll.u32 [#allocation10], 4
      %s504 = int_to_ptr.vmem [resolvable:$true] %s503
      %506 = dma.vmem_to_hbm [thread:$0]  %s504, 128, %s9, [#allocation4]
    $region57: #{grid_decoder_forward.1} parent=1 // pred_fallthru
      _
    // Predicated region
    $region58: #{grid_decoder_forward.1} parent=1 // pred_check
      _
    $region59: #{grid_decoder_forward.1} parent=1 // pred_check_branch
      %508 = sbr.rel (0) target = $region61
    $region60: #{grid_decoder_forward.1} parent=1 // pred_region
      %509 = dma.done [#allocation4], 128
    $region61: #{grid_decoder_forward.1} parent=1 // pred_fallthru
      _
    %510 = vsyncpa [#allocation3], 1
    %511 = vsyncpa [#allocation6], 1
    %512 = vsyncpa [#allocation9], 1
    %513 = vsyncpa [#allocation4], 1

</llo_original>
